<compile_context>
chip_gen: v6e
topology: v6e:2x2x1
jax: 0.10.0
libtpu: 0.0.40
codegen_flags: <defaults>
</compile_context>

<pallas_src>
import jax
import jax.numpy as jnp
from jax.experimental import pallas as pl
from jax.experimental.pallas import tpu as pltpu


def _net_kernel(x_ref, w_ref, b_ref, o_ref):
    """One grid step: a block of `tb` Net instances.

    x_ref: [tb, N, F_in]  bf16   (N = per-instance batch = 8)
    w_ref: [F_in, F_out]  bf16   (pre-transposed weight, W^T)
    b_ref: [1, F_out]     f32
    o_ref: [tb, N, F_out] f32
    """
    tb, n, f_in = x_ref.shape
    f_out = w_ref.shape[1]

    # Flatten the block to one sublane-dense GEMM: [tb*N, F_in] @ [F_in, F_out].
    x = x_ref[...].reshape(tb * n, f_in)
    y = jnp.dot(x, w_ref[...], preferred_element_type=jnp.float32)   # f32 accum
    y = y + b_ref[...]                                # VPU add, broadcast [1,F_out]

    # Per-instance softmax over dim=0 (the N axis), numerically stable, all f32.
    y = y.reshape(tb, n, f_out)
    m = jnp.max(y, axis=1, keepdims=True)             # [tb, 1, F_out]
    e = jnp.exp(y - m)                                # [tb, N, F_out]
    denom = jnp.sum(e, axis=1, keepdims=True)         # [tb, 1, F_out]
    o_ref[...] = (e / denom).astype(o_ref.dtype)      # exact divide: sums to 1


def prepare_params(weight, bias):
    """One-time parameter prep (NOT per call): pre-transpose W, cast for the MXU."""
    w_t = weight.astype(jnp.bfloat16).T               # [F_in, F_out] bf16
    bias_row = bias.astype(jnp.float32).reshape(1, -1)  # [1, F_out]  f32
    return w_t, bias_row


def net_forward_batched(features_b, w_t, bias_row, *, block_b=256):
    """Batched forward: B independent Net instances in one pallas_call.

    features_b: [B, N, F_in] (any float dtype; cast to bf16 for the MXU)
    Returns [B, N, F_out] float32.
    """
    b, n, f_in = features_b.shape
    f_out = w_t.shape[1]

    block_b = max(1, min(block_b, b))
    pad = (-b) % block_b

    x = features_b.astype(jnp.bfloat16)
    if pad:
        x = jnp.concatenate(
            [x, jnp.zeros((pad, n, f_in), dtype=jnp.bfloat16)], axis=0)
    bp = b + pad

    out = pl.pallas_call(
        _net_kernel,
        out_shape=jax.ShapeDtypeStruct((bp, n, f_out), jnp.float32),
        grid_spec=pltpu.PrefetchScalarGridSpec(
            num_scalar_prefetch=0,
            grid=(bp // block_b,),
            in_specs=[
                pl.BlockSpec((block_b, n, f_in), lambda i: (i, 0, 0)),
                pl.BlockSpec((f_in, f_out), lambda i: (0, 0)),
                pl.BlockSpec((1, f_out), lambda i: (0, 0)),
            ],
            out_specs=pl.BlockSpec((block_b, n, f_out), lambda i: (i, 0, 0)),
        ),
        compiler_params=pltpu.CompilerParams(
            # Parallel batch axis: Mosaic can shard grid steps across the two
            # TensorCores on v7x; no-op on single-TC v5e/v6e.
            dimension_semantics=("parallel",),
            # Explicit limit, sized well under v7x's 64 MiB physical VMEM
            # (blocks here are a few hundred KiB even double-buffered).
            vmem_limit_bytes=32 * 1024 * 1024,
        ),
    )(x, w_t, bias_row)

    return out[:b] if pad else out


def net_forward(seek, service, features, w_t, bias_row):
    """Pallas equivalent of Net.forward(seek, service, features) (single instance)."""
    del seek, service  # unused by the PyTorch forward pass
    # TODO(synk): at true single-instance [8,5] scale a fused XLA
    # softmax(features @ W.T + b, axis=0) is cheaper than any custom-call
    # boundary; kept on the (B=1) Pallas path here so the module forward is
    # exercised by the same kernel as the batched variant.
    return net_forward_batched(features[None], w_t, bias_row, block_b=1)[0]


if __name__ == "__main__":
    key = jax.random.PRNGKey(0)
    k_feat, k_w, k_b, k_seek, k_service = jax.random.split(key, 5)

    N, F = 8, 5       # per-instance batch = 8, features = 5 (nn.Linear(5, 5))
    B = 64            # number of Net instances batched per pallas_call

    features_b = jax.random.normal(k_feat, (B, N, F), dtype=jnp.float32)
    # Deterministic parameter init (mimics nn.Linear's uniform(-1/sqrt(fan_in), ...))
    bound = 1.0 / (F ** 0.5)
    weight = jax.random.uniform(k_w, (F, F), minval=-bound, maxval=bound,
                                dtype=jnp.float32)
    bias = jax.random.uniform(k_b, (F,), minval=-bound, maxval=bound,
                              dtype=jnp.float32)

    # `seek` and `service` are unused inputs; give them placeholder values.
    seek = jax.random.normal(k_seek, (N,), dtype=jnp.float32)
    service = jax.random.normal(k_service, (N,), dtype=jnp.float32)

    # One-time parameter setup (pre-transpose + dtype prep, NOT per call).
    w_t, bias_row = prepare_params(weight, bias)

    # Batched path: amortizes the pallas_call/DMA boundary over many instances.
    out_b = jax.block_until_ready(
        net_forward_batched(features_b, w_t, bias_row, block_b=32))

    # Single-instance module semantics: Net.forward(seek, service, features).
    out_1 = jax.block_until_ready(
        net_forward(seek, service, features_b[0], w_t, bias_row))

    # Reference check in plain f32 JAX (module semantics). Tolerance covers the
    # bf16 cast of the MXU inputs (~2^-8 relative on a K=5 contraction).
    ref_y = jnp.einsum("bnf,gf->bng", features_b, weight) + bias
    ref_b = jax.nn.softmax(ref_y, axis=1)            # dim=0 per instance
    assert out_b.shape == (B, N, F)
    assert jnp.allclose(out_b, ref_b, atol=2e-2, rtol=2e-2), "batched mismatch"
    assert jnp.allclose(out_1, ref_b[0], atol=2e-2, rtol=2e-2), "single mismatch"
    # Exact divide => per-instance columns sum to 1 (up to f32 rounding).
    assert jnp.allclose(out_b.sum(axis=1), 1.0, atol=1e-5), "not normalized"

    print("KERNEL_OK")
</pallas_src>

<mosaic_0001>
module attributes {stable_mosaic.version = 11 : i64} {
  func.func @_net_kernel(%arg0: i32, %arg1: memref<32x8x5xbf16, #tpu.memory_space<vmem>>, %arg2: memref<5x5xbf16, #tpu.memory_space<vmem>>, %arg3: memref<1x5xf32, #tpu.memory_space<vmem>>, %arg4: memref<32x8x5xf32, #tpu.memory_space<vmem>>) attributes {dimension_semantics = [#tpu.dimension_semantics<parallel>], iteration_bounds = array<i64: 2>, scalar_prefetch = 0 : i64, scratch_operands = 0 : i64, tpu.core_type = #tpu.core_type<tc>, window_params = [{transform_indices = @transform_0, window_bounds = array<i64: 32, 8, 5>}, {pipeline_mode = #tpu.pipeline_mode<synchronous>, transform_indices = @transform_1, window_bounds = array<i64: 5, 5>}, {pipeline_mode = #tpu.pipeline_mode<synchronous>, transform_indices = @transform_2, window_bounds = array<i64: 1, 5>}, {transform_indices = @transform_3, window_bounds = array<i64: 32, 8, 5>}]} {
    %c0 = arith.constant 0 : index
    %c0_0 = arith.constant 0 : index
    %c0_1 = arith.constant 0 : index
    %0 = vector.load %arg1[%c0, %c0_0, %c0_1] : memref<32x8x5xbf16, #tpu.memory_space<vmem>>, vector<32x8x5xbf16>
    %1 = vector.shape_cast %0 : vector<32x8x5xbf16> to vector<256x5xbf16>
    %c0_2 = arith.constant 0 : index
    %c0_3 = arith.constant 0 : index
    %2 = vector.load %arg2[%c0_2, %c0_3] : memref<5x5xbf16, #tpu.memory_space<vmem>>, vector<5x5xbf16>
    %cst = arith.constant dense<0.000000e+00> : vector<256x5xf32>
    %3 = tpu.matmul %1, %2, %cst {dimension_numbers = #tpu.dot_dimension_numbers<[1], [0], [0], [1], [0, 0, 1, 1], [], []>} : vector<256x5xbf16>, vector<5x5xbf16>, vector<256x5xf32> -> vector<256x5xf32>
    %c0_4 = arith.constant 0 : index
    %c0_5 = arith.constant 0 : index
    %4 = vector.load %arg3[%c0_4, %c0_5] : memref<1x5xf32, #tpu.memory_space<vmem>>, vector<1x5xf32>
    %5 = vector.broadcast %4 : vector<1x5xf32> to vector<256x5xf32>
    %6 = arith.addf %3, %5 : vector<256x5xf32>
    %7 = vector.shape_cast %6 : vector<256x5xf32> to vector<32x8x5xf32>
    %cst_6 = arith.constant dense<0xFF800000> : vector<32x5xf32>
    %8 = vector.multi_reduction <maximumf>, %7, %cst_6 [1] : vector<32x8x5xf32> to vector<32x5xf32>
    %9 = vector.shape_cast %8 : vector<32x5xf32> to vector<32x1x5xf32>
    %10 = vector.broadcast %9 : vector<32x1x5xf32> to vector<32x8x5xf32>
    %11 = arith.subf %7, %10 : vector<32x8x5xf32>
    %12 = math.exp %11 : vector<32x8x5xf32>
    %cst_7 = arith.constant dense<0.000000e+00> : vector<32x5xf32>
    %13 = vector.multi_reduction <add>, %12, %cst_7 [1] : vector<32x8x5xf32> to vector<32x5xf32>
    %14 = vector.shape_cast %13 : vector<32x5xf32> to vector<32x1x5xf32>
    %15 = vector.broadcast %14 : vector<32x1x5xf32> to vector<32x8x5xf32>
    %16 = arith.divf %12, %15 : vector<32x8x5xf32>
    %c0_8 = arith.constant 0 : index
    %c0_9 = arith.constant 0 : index
    %c0_10 = arith.constant 0 : index
    %17 = vector.load %arg4[%c0_8, %c0_9, %c0_10] : memref<32x8x5xf32, #tpu.memory_space<vmem>>, vector<32x8x5xf32>
    tpu.vector_store %arg4[%c0_8, %c0_9, %c0_10], %16 {strides = array<i32>} : memref<32x8x5xf32, #tpu.memory_space<vmem>>, vector<32x8x5xf32>,
    return
  }
  func.func @transform_0(%arg0: i32) -> (i32, i32, i32) {
    %c0_i32 = arith.constant 0 : i32
    %c0_i32_0 = arith.constant 0 : i32
    %c0_i32_1 = arith.constant 0 : i32
    return %arg0, %c0_i32, %c0_i32_0 : i32, i32, i32
  }
  func.func @transform_1(%arg0: i32) -> (i32, i32) {
    %c0_i32 = arith.constant 0 : i32
    %c0_i32_0 = arith.constant 0 : i32
    %c0_i32_1 = arith.constant 0 : i32
    return %c0_i32, %c0_i32_0 : i32, i32
  }
  func.func @transform_2(%arg0: i32) -> (i32, i32) {
    %c0_i32 = arith.constant 0 : i32
    %c0_i32_0 = arith.constant 0 : i32
    %c0_i32_1 = arith.constant 0 : i32
    return %c0_i32, %c0_i32_0 : i32, i32
  }
  func.func @transform_3(%arg0: i32) -> (i32, i32, i32) {
    %c0_i32 = arith.constant 0 : i32
    %c0_i32_0 = arith.constant 0 : i32
    %c0_i32_1 = arith.constant 0 : i32
    return %arg0, %c0_i32, %c0_i32_0 : i32, i32, i32
  }
}

</mosaic_0001>

<llo_original>
// kernel: tpu_custom_call.1
$region0: #{tpu_custom_call.1}
  #allocation0 [shape = 'u32[]', space=smem, size = 0x4, offset = 0x4, fixed_abs, tag = 'smem constant byte address 0x4 - core index']
  #allocation1 [shape = 'u32[144,128]{1,0:T(1,128)}', space=vmem, size = 0x12000, scoped, tag = 'internal scratch']
  %s0 = inlined_call_operand.vmem [shape: bf16[64,8,5], index: 0, kind: input, shape index: {}]
  %s1 = inlined_call_operand.vmem [shape: bf16[5,5], index: 1, kind: input, shape index: {}]
  %s2 = inlined_call_operand.vmem [shape: f32[1,5], index: 2, kind: input, shape index: {}]
  %s3 = inlined_call_operand.vmem [shape: f32[64,8,5], index: 3, kind: output, shape index: {}]
  %s4 = sld [smem:[#allocation0]]
  $region45: #{tpu_custom_call.1} parent=0
    _
  %s6 = ssub.s32 1, %s4
  %s7 = scalar_select 0, %s6, %s4
  loop: start=0, step=1, limit=4
  $region2: #{tpu_custom_call.1} parent=0 // loop_pre_header
    _
  $region3: #{tpu_custom_call.1} parent=0 // loop_header
    %s9 = sphi 0, %s13
    %p10 = scmp.ge.s32.totalorder %s9, 4
    %s19 = sphi 0, %s21
    %s22 = sphi 0, %s19
    %s23 = sphi 0, %s22
    %s39 = sphi 0, %s23
    %s43 = sphi 0, %s43
    %s45 = sphi 0, %s43
    %s46 = sphi 0, %s45
    %s60 = sphi 0, %s46
    %s64 = sphi 0, %s64
    %s66 = sphi 0, %s64
    %s67 = sphi 0, %s66
    %s81 = sphi 0, %s67
    %s87 = sphi 0, %s89
    %s90 = sphi 0, %s87
    %s91 = sphi 0, %s90
    %s107 = sphi 0, %s91
  $region4: #{tpu_custom_call.1} parent=0 // loop_header_branch
    %12 = sbr.rel (%p10) target = $region8
  $region5: #{tpu_custom_call.1} parent=0 // loop_body
    %s14 = ssub.s32 %s9, 1
    %s15 = ssub.s32 %s9, 2
    %s16 = sadd.s32 %s9, 1
    %s17 = ssub.s32 %s9, %s16
    %p18 = scmp.eq.s32.totalorder %s17, 0
    %s20 = sadd.s32 %s19, 1
    %s21 = scalar_select %p18, %s19, %s20
    %p24 = pneg %p18
    %p25 = scmp.eq.s32.totalorder %s9, 1
    %p26 = por %p24, %p25
    %p27 = scmp.ne.s32.totalorder %s19, %s22
    %p28 = scmp.eq.s32.totalorder %s9, 0
    %p29 = por %p27, %p28
    %p30 = scmp.ne.s32.totalorder %s19, %s22
    %p31 = scmp.eq.s32.totalorder %s14, 1
    %p32 = por %p30, %p31
    %p33 = scmp.ne.s32.totalorder %s22, %s23
    %p34 = scmp.eq.s32.totalorder %s14, 0
    %p35 = por %p33, %p34
    %p36 = scmp.ne.s32.totalorder %s22, %s23
    %p37 = scmp.eq.s32.totalorder %s15, 1
    %p38 = por %p36, %p37
    %p40 = scmp.ne.s32.totalorder %s23, %s39
    %p41 = scmp.eq.s32.totalorder %s15, 0
    %p42 = por %p40, %p41
    %s44 = sadd.s32 %s43, 1
    %p47 = scmp.eq.s32.totalorder %s9, 1
    %p48 = scmp.ne.s32.totalorder %s43, %s45
    %p49 = scmp.eq.s32.totalorder %s9, 0
    %p50 = por %p48, %p49
    %p51 = scmp.ne.s32.totalorder %s43, %s45
    %p52 = scmp.eq.s32.totalorder %s14, 1
    %p53 = por %p51, %p52
    %p54 = scmp.ne.s32.totalorder %s45, %s46
    %p55 = scmp.eq.s32.totalorder %s14, 0
    %p56 = por %p54, %p55
    %p57 = scmp.ne.s32.totalorder %s45, %s46
    %p58 = scmp.eq.s32.totalorder %s15, 1
    %p59 = por %p57, %p58
    %p61 = scmp.ne.s32.totalorder %s46, %s60
    %p62 = scmp.eq.s32.totalorder %s15, 0
    %p63 = por %p61, %p62
    %s65 = sadd.s32 %s64, 1
    %p68 = scmp.eq.s32.totalorder %s9, 1
    %p69 = scmp.ne.s32.totalorder %s64, %s66
    %p70 = scmp.eq.s32.totalorder %s9, 0
    %p71 = por %p69, %p70
    %p72 = scmp.ne.s32.totalorder %s64, %s66
    %p73 = scmp.eq.s32.totalorder %s14, 1
    %p74 = por %p72, %p73
    %p75 = scmp.ne.s32.totalorder %s66, %s67
    %p76 = scmp.eq.s32.totalorder %s14, 0
    %p77 = por %p75, %p76
    %p78 = scmp.ne.s32.totalorder %s66, %s67
    %p79 = scmp.eq.s32.totalorder %s15, 1
    %p80 = por %p78, %p79
    %p82 = scmp.ne.s32.totalorder %s67, %s81
    %p83 = scmp.eq.s32.totalorder %s15, 0
    %p84 = por %p82, %p83
    %s85 = ssub.s32 %s9, %s16
    %p86 = scmp.eq.s32.totalorder %s85, 0
    %s88 = sadd.s32 %s87, 1
    %s89 = scalar_select %p86, %s87, %s88
    %p92 = pneg %p86
    %p93 = scmp.eq.s32.totalorder %s9, 1
    %p94 = por %p92, %p93
    %p95 = scmp.ne.s32.totalorder %s87, %s90
    %p96 = scmp.eq.s32.totalorder %s9, 0
    %p97 = por %p95, %p96
    %p98 = scmp.ne.s32.totalorder %s87, %s90
    %p99 = scmp.eq.s32.totalorder %s14, 1
    %p100 = por %p98, %p99
    %p101 = scmp.ne.s32.totalorder %s90, %s91
    %p102 = scmp.eq.s32.totalorder %s14, 0
    %p103 = por %p101, %p102
    %p104 = scmp.ne.s32.totalorder %s90, %s91
    %p105 = scmp.eq.s32.totalorder %s15, 1
    %p106 = por %p104, %p105
    %p108 = scmp.ne.s32.totalorder %s91, %s107
    %p109 = scmp.eq.s32.totalorder %s15, 0
    %p110 = por %p108, %p109
    %p111 = scmp.le.s32.totalorder 1, %s9
    %p112 = scmp.lt.s32.totalorder %s9, 3
    %p113 = pnand %p111, %p112
    %p114 = pneg %p113
    // Predicated region
    $region9: #{tpu_custom_call.1} parent=5 // pred_check
      _
    $region10: #{tpu_custom_call.1} parent=5 // pred_check_branch
      %116 = sbr.rel (%p113) target = $region12
    $region11: #{tpu_custom_call.1} parent=5 // pred_region
      %s117 = ssub.s32 %s9, 1
      // Predicated region
      $region13: #{tpu_custom_call.1} parent=11 // pred_check
        %p118 = pneg %p56
      $region14: #{tpu_custom_call.1} parent=11 // pred_check_branch
        %120 = sbr.rel (%p118) target = $region16
      $region15: #{tpu_custom_call.1} parent=11 // pred_region
        _
      $region16: #{tpu_custom_call.1} parent=11 // pred_fallthru
        _
      // Predicated region
      $region17: #{tpu_custom_call.1} parent=11 // pred_check
        %p121 = pneg %p77
      $region18: #{tpu_custom_call.1} parent=11 // pred_check_branch
        %123 = sbr.rel (%p121) target = $region20
      $region19: #{tpu_custom_call.1} parent=11 // pred_region
        _
      $region20: #{tpu_custom_call.1} parent=11 // pred_fallthru
        _
    $region12: #{tpu_custom_call.1} parent=5 // pred_fallthru
      _
    %p124 = scmp.lt.s32.totalorder %s9, 2
    // Predicated region
    $region21: #{tpu_custom_call.1} parent=5 // pred_check
      %p125 = pneg %p124
    $region22: #{tpu_custom_call.1} parent=5 // pred_check_branch
      %127 = sbr.rel (%p125) target = $region24
    $region23: #{tpu_custom_call.1} parent=5 // pred_region
      // Predicated region
      $region25: #{tpu_custom_call.1} parent=23 // pred_check
        %p128 = pneg %p29
      $region26: #{tpu_custom_call.1} parent=23 // pred_check_branch
        %130 = sbr.rel (%p128) target = $region28
      $region27: #{tpu_custom_call.1} parent=23 // pred_region
        %s131 = smul.u32 32, %s9
        %p132 = scmp.lt.s32.totalorder %s131, 63
        %s133 = scalar_select %p132, %s131, 63
        %s134 = smul.addr %s133, 4
        %s135 = scalar_lea.vmem %s0, %s134
        %s136 = smul.u32 32, %s9
      $region28: #{tpu_custom_call.1} parent=23 // pred_fallthru
        _
    $region24: #{tpu_custom_call.1} parent=5 // pred_fallthru
      _
    %p137 = scmp.le.s32.totalorder 1, %s9
    %p138 = scmp.lt.s32.totalorder %s9, 3
    %p139 = pnand %p137, %p138
    %p140 = pneg %p139
    // Predicated region
    $region29: #{tpu_custom_call.1} parent=5 // pred_check
      _
    $region30: #{tpu_custom_call.1} parent=5 // pred_check_branch
      %142 = sbr.rel (%p139) target = $region32
    $region31: #{tpu_custom_call.1} parent=5 // pred_region
      %s143 = ssub.s32 %s9, 1
      %s144 = smul.u32 32, %s14
      %p145 = scmp.lt.s32.totalorder %s144, 63
      %s146 = scalar_select %p145, %s144, 63
      %s147 = smul.addr %s146, 4
      %s148 = scalar_lea.vmem %s0, %s147
      %p149 = pneg %p35
      %p150 = pneg %p32
      %p151 = pneg %p56
      %p152 = pneg %p53
      %p153 = pneg %p77
      %p154 = pneg %p74
      %p155 = pneg %p103
      %p156 = pneg %p100
      %s157 = smul.u32 32, %s14
      %p158 = scmp.lt.s32.totalorder %s157, 63
      %s159 = scalar_select %p158, %s157, 63
      %s160 = smul.addr %s159, 8
      %s161 = scalar_lea.vmem %s3, %s160
      %s162 = smul.u32 32, %s14
      %p163 = scmp.lt.s32.totalorder %s162, 63
      %s164 = scalar_select %p163, %s162, 63
      %s165 = smul.addr %s164, 4
      %s166 = scalar_lea.vmem %s0, %s165
      %s167 = smul.u32 32, %s14
      %s168 = smul.u32 32, %s14
      %p169 = scmp.lt.s32.totalorder %s168, 63
      %s170 = scalar_select %p169, %s168, 63
      %s171 = smul.addr %s170, 8
      %s172 = scalar_lea.vmem %s3, %s171
      %s173 = smul.u32 32, %s14
      %v175 = vld [vmem:[%s166] sm:$0xf]
      %v176 = vld [vmem:[%s166 + $0x4] sm:$0xf]
      %v177 = vld [vmem:[%s166 + $0x8] sm:$0xf]
      %v178 = vld [vmem:[%s166 + $0xc] sm:$0xf]
      %v179 = vld [vmem:[%s166 + $0x10] sm:$0xf]
      %v180 = vld [vmem:[%s166 + $0x14] sm:$0xf]
      %v181 = vld [vmem:[%s166 + $0x18] sm:$0xf]
      %v182 = vld [vmem:[%s166 + $0x1c] sm:$0xf]
      %v183 = vld [vmem:[%s166 + $0x20] sm:$0xf]
      %v184 = vld [vmem:[%s166 + $0x24] sm:$0xf]
      %v185 = vld [vmem:[%s166 + $0x28] sm:$0xf]
      %v186 = vld [vmem:[%s166 + $0x2c] sm:$0xf]
      %v187 = vld [vmem:[%s166 + $0x30] sm:$0xf]
      %v188 = vld [vmem:[%s166 + $0x34] sm:$0xf]
      %v189 = vld [vmem:[%s166 + $0x38] sm:$0xf]
      %v190 = vld [vmem:[%s166 + $0x3c] sm:$0xf]
      %v191 = vld [vmem:[%s166 + $0x40] sm:$0xf]
      %v192 = vld [vmem:[%s166 + $0x44] sm:$0xf]
      %v193 = vld [vmem:[%s166 + $0x48] sm:$0xf]
      %v194 = vld [vmem:[%s166 + $0x4c] sm:$0xf]
      %v195 = vld [vmem:[%s166 + $0x50] sm:$0xf]
      %v196 = vld [vmem:[%s166 + $0x54] sm:$0xf]
      %v197 = vld [vmem:[%s166 + $0x58] sm:$0xf]
      %v198 = vld [vmem:[%s166 + $0x5c] sm:$0xf]
      %v199 = vld [vmem:[%s166 + $0x60] sm:$0xf]
      %v200 = vld [vmem:[%s166 + $0x64] sm:$0xf]
      %v201 = vld [vmem:[%s166 + $0x68] sm:$0xf]
      %v202 = vld [vmem:[%s166 + $0x6c] sm:$0xf]
      %v203 = vld [vmem:[%s166 + $0x70] sm:$0xf]
      %v204 = vld [vmem:[%s166 + $0x74] sm:$0xf]
      %v205 = vld [vmem:[%s166 + $0x78] sm:$0xf]
      %v206 = vld [vmem:[%s166 + $0x7c] sm:$0xf]
      %v207 = vld [vmem:[%s1] sm:$0x7]
      %v208 = vld [vmem:[%s2] sm:$0x1]
      %v210 = vlaneseq
      %v211 = vshrl.u32 %v210, 7
      %v212 = vsub.s32 0, %v211
      %v213 = vrot.slane %v208, %v212
      %v247 = vunpack.c.l.b16 %v175
      %v248 = vunpack.c.l.b16 %v176
      %v249 = vunpack.c.l.b16 %v177
      %v250 = vunpack.c.l.b16 %v178
      %v251 = vunpack.c.l.b16 %v179
      %v252 = vunpack.c.l.b16 %v180
      %v253 = vunpack.c.l.b16 %v181
      %v254 = vunpack.c.l.b16 %v182
      %v255 = vunpack.c.l.b16 %v183
      %v256 = vunpack.c.l.b16 %v184
      %v257 = vunpack.c.l.b16 %v185
      %v258 = vunpack.c.l.b16 %v186
      %v259 = vunpack.c.l.b16 %v187
      %v260 = vunpack.c.l.b16 %v188
      %v261 = vunpack.c.l.b16 %v189
      %v262 = vunpack.c.l.b16 %v190
      %v263 = vunpack.c.l.b16 %v191
      %v264 = vunpack.c.l.b16 %v192
      %v265 = vunpack.c.l.b16 %v193
      %v266 = vunpack.c.l.b16 %v194
      %v267 = vunpack.c.l.b16 %v195
      %v268 = vunpack.c.l.b16 %v196
      %v269 = vunpack.c.l.b16 %v197
      %v270 = vunpack.c.l.b16 %v198
      %v271 = vunpack.c.l.b16 %v199
      %v272 = vunpack.c.l.b16 %v200
      %v273 = vunpack.c.l.b16 %v201
      %v274 = vunpack.c.l.b16 %v202
      %v275 = vunpack.c.l.b16 %v203
      %v276 = vunpack.c.l.b16 %v204
      %v277 = vunpack.c.l.b16 %v205
      %v278 = vunpack.c.l.b16 %v206
      %v279 = vpack.c.b16 %v248, %v247
      %v280 = vpack.c.b16 %v250, %v249
      %v281 = vpack.c.b16 %v252, %v251
      %v282 = vpack.c.b16 %v254, %v253
      %v283 = vpack.c.b16 %v256, %v255
      %v284 = vpack.c.b16 %v258, %v257
      %v285 = vpack.c.b16 %v260, %v259
      %v286 = vpack.c.b16 %v262, %v261
      %v287 = vpack.c.b16 %v264, %v263
      %v288 = vpack.c.b16 %v266, %v265
      %v289 = vpack.c.b16 %v268, %v267
      %v290 = vpack.c.b16 %v270, %v269
      %v291 = vpack.c.b16 %v272, %v271
      %v292 = vpack.c.b16 %v274, %v273
      %v293 = vpack.c.b16 %v276, %v275
      %v294 = vpack.c.b16 %v278, %v277
      %vm295 = vcmask 39936
      %v297 = vsel %vm295, %v279, 0
      %v300 = vsel %vm295, %v280, 0
      %v303 = vsel %vm295, %v281, 0
      %v306 = vsel %vm295, %v282, 0
      %v309 = vsel %vm295, %v283, 0
      %v312 = vsel %vm295, %v284, 0
      %v315 = vsel %vm295, %v285, 0
      %v318 = vsel %vm295, %v286, 0
      %v321 = vsel %vm295, %v287, 0
      %v324 = vsel %vm295, %v288, 0
      %v327 = vsel %vm295, %v289, 0
      %v330 = vsel %vm295, %v290, 0
      %v333 = vsel %vm295, %v291, 0
      %v336 = vsel %vm295, %v292, 0
      %v339 = vsel %vm295, %v293, 0
      %v342 = vsel %vm295, %v294, 0
      %vm344 = vcmask 1041408
      %vm345 = vcmask 1042432
      %v346 = vsel %vm344, 4294967295, 65535
      %v347 = vsel %vm345, %v346, 0
      %v349 = vand.u32 %v207, %v347
      %351 = vmatprep.subr.bf16.mxu0 0
      %352 = vmatpush1.bf16.msra.mxu0 0
      %353 = vmatprep.subr.bf16.mxu0 0
      %354 = vmatpush1.bf16.msra.mxu0 0
      %355 = vmatprep.subr.bf16.mxu0 0
      %356 = vmatpush1.bf16.msra.mxu0 0
      %357 = vmatprep.subr.bf16.mxu0 0
      %358 = vmatpush1.bf16.msra.mxu0 0
      %359 = vmatprep.subr.bf16.mxu0 0
      %360 = vmatpush1.bf16.msra.mxu0 0
      %361 = vmatprep.subr.bf16.mxu0 0
      %362 = vmatpush1.bf16.msra.mxu0 0
      %363 = vmatprep.subr.bf16.mxu0 0
      %364 = vmatpush1.bf16.msra.mxu0 0
      %365 = vmatprep.subr.bf16.mxu0 0
      %366 = vmatpush1.bf16.msra.mxu0 %v349
      %367 = vmatprep.subr.bf16.mxu0 0
      %368 = vmatpush2.bf16.msra.mxu0 0
      %369 = vmatprep.subr.bf16.mxu0 0
      %370 = vmatpush2.bf16.msra.mxu0 0
      %371 = vmatprep.subr.bf16.mxu0 0
      %372 = vmatpush2.bf16.msra.mxu0 0
      %373 = vmatprep.subr.bf16.mxu0 0
      %374 = vmatpush2.bf16.msra.mxu0 0
      %375 = vmatprep.subr.bf16.mxu0 0
      %376 = vmatpush2.bf16.msra.mxu0 0
      %377 = vmatprep.subr.bf16.mxu0 0
      %378 = vmatpush2.bf16.msra.mxu0 0
      %379 = vmatprep.subr.bf16.mxu0 0
      %380 = vmatpush2.bf16.msra.mxu0 0
      %381 = vmatprep.subr.bf16.mxu0 0
      %382 = vmatpush2.bf16.msra.mxu0 0
      %383 = vmatprep.mubr.bf16.mxu0 0
      %384 = vmatmul.mubr.bf16.gmra.mxu0 %v297
      %v385 = vpop.f32.mrf.mxu0
      %v386 = vadd.f32 %v213, %v385
      %v387 = vpop.f32.mrf.mxu0
      %v388 = vpop.f32.mrf.mxu0
      %v389 = vadd.f32 %v213, %v388
      %v390 = vpop.f32.mrf.mxu0
      %391 = vmatprep.mubr.bf16.mxu0 0
      %392 = vmatmul.mubr.bf16.gmra.mxu0 %v300
      %v393 = vpop.f32.mrf.mxu0
      %v394 = vadd.f32 %v213, %v393
      %v395 = vpop.f32.mrf.mxu0
      %v396 = vpop.f32.mrf.mxu0
      %v397 = vadd.f32 %v213, %v396
      %v398 = vpop.f32.mrf.mxu0
      %399 = vmatprep.mubr.bf16.mxu0 0
      %400 = vmatmul.mubr.bf16.gmra.mxu0 %v303
      %v401 = vpop.f32.mrf.mxu0
      %v402 = vadd.f32 %v213, %v401
      %v403 = vpop.f32.mrf.mxu0
      %v404 = vpop.f32.mrf.mxu0
      %v405 = vadd.f32 %v213, %v404
      %v406 = vpop.f32.mrf.mxu0
      %407 = vmatprep.mubr.bf16.mxu0 0
      %408 = vmatmul.mubr.bf16.gmra.mxu0 %v306
      %v409 = vpop.f32.mrf.mxu0
      %v410 = vadd.f32 %v213, %v409
      %v411 = vpop.f32.mrf.mxu0
      %v412 = vpop.f32.mrf.mxu0
      %v413 = vadd.f32 %v213, %v412
      %v414 = vpop.f32.mrf.mxu0
      %415 = vmatprep.mubr.bf16.mxu0 0
      %416 = vmatmul.mubr.bf16.gmra.mxu0 %v309
      %v417 = vpop.f32.mrf.mxu0
      %v418 = vadd.f32 %v213, %v417
      %v419 = vpop.f32.mrf.mxu0
      %v420 = vpop.f32.mrf.mxu0
      %v421 = vadd.f32 %v213, %v420
      %v422 = vpop.f32.mrf.mxu0
      %423 = vmatprep.mubr.bf16.mxu0 0
      %424 = vmatmul.mubr.bf16.gmra.mxu0 %v312
      %v425 = vpop.f32.mrf.mxu0
      %v426 = vadd.f32 %v213, %v425
      %v427 = vpop.f32.mrf.mxu0
      %v428 = vpop.f32.mrf.mxu0
      %v429 = vadd.f32 %v213, %v428
      %v430 = vpop.f32.mrf.mxu0
      %431 = vmatprep.mubr.bf16.mxu0 0
      %432 = vmatmul.mubr.bf16.gmra.mxu0 %v315
      %v433 = vpop.f32.mrf.mxu0
      %v434 = vadd.f32 %v213, %v433
      %v435 = vpop.f32.mrf.mxu0
      %v436 = vpop.f32.mrf.mxu0
      %v437 = vadd.f32 %v213, %v436
      %v438 = vpop.f32.mrf.mxu0
      %439 = vmatprep.mubr.bf16.mxu0 0
      %440 = vmatmul.mubr.bf16.gmra.mxu0 %v318
      %v441 = vpop.f32.mrf.mxu0
      %v442 = vadd.f32 %v213, %v441
      %v443 = vpop.f32.mrf.mxu0
      %v444 = vpop.f32.mrf.mxu0
      %v445 = vadd.f32 %v213, %v444
      %v446 = vpop.f32.mrf.mxu0
      %447 = vmatprep.mubr.bf16.mxu0 0
      %448 = vmatmul.mubr.bf16.gmra.mxu0 %v321
      %v449 = vpop.f32.mrf.mxu0
      %v450 = vadd.f32 %v213, %v449
      %v451 = vpop.f32.mrf.mxu0
      %v452 = vpop.f32.mrf.mxu0
      %v453 = vadd.f32 %v213, %v452
      %v454 = vpop.f32.mrf.mxu0
      %455 = vmatprep.mubr.bf16.mxu0 0
      %456 = vmatmul.mubr.bf16.gmra.mxu0 %v324
      %v457 = vpop.f32.mrf.mxu0
      %v458 = vadd.f32 %v213, %v457
      %v459 = vpop.f32.mrf.mxu0
      %v460 = vpop.f32.mrf.mxu0
      %v461 = vadd.f32 %v213, %v460
      %v462 = vpop.f32.mrf.mxu0
      %463 = vmatprep.mubr.bf16.mxu0 0
      %464 = vmatmul.mubr.bf16.gmra.mxu0 %v327
      %v465 = vpop.f32.mrf.mxu0
      %v466 = vadd.f32 %v213, %v465
      %v467 = vpop.f32.mrf.mxu0
      %v468 = vpop.f32.mrf.mxu0
      %v469 = vadd.f32 %v213, %v468
      %v470 = vpop.f32.mrf.mxu0
      %471 = vmatprep.mubr.bf16.mxu0 0
      %472 = vmatmul.mubr.bf16.gmra.mxu0 %v330
      %v473 = vpop.f32.mrf.mxu0
      %v474 = vadd.f32 %v213, %v473
      %v475 = vpop.f32.mrf.mxu0
      %v476 = vpop.f32.mrf.mxu0
      %v477 = vadd.f32 %v213, %v476
      %v478 = vpop.f32.mrf.mxu0
      %479 = vmatprep.mubr.bf16.mxu0 0
      %480 = vmatmul.mubr.bf16.gmra.mxu0 %v333
      %v481 = vpop.f32.mrf.mxu0
      %v482 = vadd.f32 %v213, %v481
      %v483 = vpop.f32.mrf.mxu0
      %v484 = vpop.f32.mrf.mxu0
      %v485 = vadd.f32 %v213, %v484
      %v486 = vpop.f32.mrf.mxu0
      %487 = vmatprep.mubr.bf16.mxu0 0
      %488 = vmatmul.mubr.bf16.gmra.mxu0 %v336
      %v489 = vpop.f32.mrf.mxu0
      %v490 = vadd.f32 %v213, %v489
      %v491 = vpop.f32.mrf.mxu0
      %v492 = vpop.f32.mrf.mxu0
      %v493 = vadd.f32 %v213, %v492
      %v494 = vpop.f32.mrf.mxu0
      %495 = vmatprep.mubr.bf16.mxu0 0
      %496 = vmatmul.mubr.bf16.gmra.mxu0 %v339
      %v497 = vpop.f32.mrf.mxu0
      %v498 = vadd.f32 %v213, %v497
      %v499 = vpop.f32.mrf.mxu0
      %v500 = vpop.f32.mrf.mxu0
      %v501 = vadd.f32 %v213, %v500
      %v502 = vpop.f32.mrf.mxu0
      %503 = vmatprep.mubr.bf16.mxu0 0
      %504 = vmatmul.mubr.bf16.gmra.mxu0 %v342
      %v505 = vpop.f32.mrf.mxu0
      %v506 = vadd.f32 %v213, %v505
      %v507 = vpop.f32.mrf.mxu0
      %v508 = vpop.f32.mrf.mxu0
      %v509 = vadd.f32 %v213, %v508
      %v510 = vpop.f32.mrf.mxu0
      %511 = vdwg.mxu0
      %v512 = vsel %vm295, %v386, -inf
      %v513 = vrot.slane %v512, 4
      %v514 = vmax.f32 %v512, %v513
      %v515 = vrot.slane %v514, 2
      %v516 = vmax.f32 %v514, %v515
      %v517 = vrot.slane %v516, 1
      %v518 = vmax.f32 %v516, %v517
      %v519 = vsel %vm295, %v389, -inf
      %v520 = vrot.slane %v519, 4
      %v521 = vmax.f32 %v519, %v520
      %v522 = vrot.slane %v521, 2
      %v523 = vmax.f32 %v521, %v522
      %v524 = vrot.slane %v523, 1
      %v525 = vmax.f32 %v523, %v524
      %v526 = vsel %vm295, %v394, -inf
      %v527 = vrot.slane %v526, 4
      %v528 = vmax.f32 %v526, %v527
      %v529 = vrot.slane %v528, 2
      %v530 = vmax.f32 %v528, %v529
      %v531 = vrot.slane %v530, 1
      %v532 = vmax.f32 %v530, %v531
      %v533 = vsel %vm295, %v397, -inf
      %v534 = vrot.slane %v533, 4
      %v535 = vmax.f32 %v533, %v534
      %v536 = vrot.slane %v535, 2
      %v537 = vmax.f32 %v535, %v536
      %v538 = vrot.slane %v537, 1
      %v539 = vmax.f32 %v537, %v538
      %v540 = vsel %vm295, %v402, -inf
      %v541 = vrot.slane %v540, 4
      %v542 = vmax.f32 %v540, %v541
      %v543 = vrot.slane %v542, 2
      %v544 = vmax.f32 %v542, %v543
      %v545 = vrot.slane %v544, 1
      %v546 = vmax.f32 %v544, %v545
      %v547 = vsel %vm295, %v405, -inf
      %v548 = vrot.slane %v547, 4
      %v549 = vmax.f32 %v547, %v548
      %v550 = vrot.slane %v549, 2
      %v551 = vmax.f32 %v549, %v550
      %v552 = vrot.slane %v551, 1
      %v553 = vmax.f32 %v551, %v552
      %v554 = vsel %vm295, %v410, -inf
      %v555 = vrot.slane %v554, 4
      %v556 = vmax.f32 %v554, %v555
      %v557 = vrot.slane %v556, 2
      %v558 = vmax.f32 %v556, %v557
      %v559 = vrot.slane %v558, 1
      %v560 = vmax.f32 %v558, %v559
      %v561 = vsel %vm295, %v413, -inf
      %v562 = vrot.slane %v561, 4
      %v563 = vmax.f32 %v561, %v562
      %v564 = vrot.slane %v563, 2
      %v565 = vmax.f32 %v563, %v564
      %v566 = vrot.slane %v565, 1
      %v567 = vmax.f32 %v565, %v566
      %v568 = vsel %vm295, %v418, -inf
      %v569 = vrot.slane %v568, 4
      %v570 = vmax.f32 %v568, %v569
      %v571 = vrot.slane %v570, 2
      %v572 = vmax.f32 %v570, %v571
      %v573 = vrot.slane %v572, 1
      %v574 = vmax.f32 %v572, %v573
      %v575 = vsel %vm295, %v421, -inf
      %v576 = vrot.slane %v575, 4
      %v577 = vmax.f32 %v575, %v576
      %v578 = vrot.slane %v577, 2
      %v579 = vmax.f32 %v577, %v578
      %v580 = vrot.slane %v579, 1
      %v581 = vmax.f32 %v579, %v580
      %v582 = vsel %vm295, %v426, -inf
      %v583 = vrot.slane %v582, 4
      %v584 = vmax.f32 %v582, %v583
      %v585 = vrot.slane %v584, 2
      %v586 = vmax.f32 %v584, %v585
      %v587 = vrot.slane %v586, 1
      %v588 = vmax.f32 %v586, %v587
      %v589 = vsel %vm295, %v429, -inf
      %v590 = vrot.slane %v589, 4
      %v591 = vmax.f32 %v589, %v590
      %v592 = vrot.slane %v591, 2
      %v593 = vmax.f32 %v591, %v592
      %v594 = vrot.slane %v593, 1
      %v595 = vmax.f32 %v593, %v594
      %v596 = vsel %vm295, %v434, -inf
      %v597 = vrot.slane %v596, 4
      %v598 = vmax.f32 %v596, %v597
      %v599 = vrot.slane %v598, 2
      %v600 = vmax.f32 %v598, %v599
      %v601 = vrot.slane %v600, 1
      %v602 = vmax.f32 %v600, %v601
      %v603 = vsel %vm295, %v437, -inf
      %v604 = vrot.slane %v603, 4
      %v605 = vmax.f32 %v603, %v604
      %v606 = vrot.slane %v605, 2
      %v607 = vmax.f32 %v605, %v606
      %v608 = vrot.slane %v607, 1
      %v609 = vmax.f32 %v607, %v608
      %v610 = vsel %vm295, %v442, -inf
      %v611 = vrot.slane %v610, 4
      %v612 = vmax.f32 %v610, %v611
      %v613 = vrot.slane %v612, 2
      %v614 = vmax.f32 %v612, %v613
      %v615 = vrot.slane %v614, 1
      %v616 = vmax.f32 %v614, %v615
      %v617 = vsel %vm295, %v445, -inf
      %v618 = vrot.slane %v617, 4
      %v619 = vmax.f32 %v617, %v618
      %v620 = vrot.slane %v619, 2
      %v621 = vmax.f32 %v619, %v620
      %v622 = vrot.slane %v621, 1
      %v623 = vmax.f32 %v621, %v622
      %v624 = vsel %vm295, %v450, -inf
      %v625 = vrot.slane %v624, 4
      %v626 = vmax.f32 %v624, %v625
      %v627 = vrot.slane %v626, 2
      %v628 = vmax.f32 %v626, %v627
      %v629 = vrot.slane %v628, 1
      %v630 = vmax.f32 %v628, %v629
      %v631 = vsel %vm295, %v453, -inf
      %v632 = vrot.slane %v631, 4
      %v633 = vmax.f32 %v631, %v632
      %v634 = vrot.slane %v633, 2
      %v635 = vmax.f32 %v633, %v634
      %v636 = vrot.slane %v635, 1
      %v637 = vmax.f32 %v635, %v636
      %v638 = vsel %vm295, %v458, -inf
      %v639 = vrot.slane %v638, 4
      %v640 = vmax.f32 %v638, %v639
      %v641 = vrot.slane %v640, 2
      %v642 = vmax.f32 %v640, %v641
      %v643 = vrot.slane %v642, 1
      %v644 = vmax.f32 %v642, %v643
      %v645 = vsel %vm295, %v461, -inf
      %v646 = vrot.slane %v645, 4
      %v647 = vmax.f32 %v645, %v646
      %v648 = vrot.slane %v647, 2
      %v649 = vmax.f32 %v647, %v648
      %v650 = vrot.slane %v649, 1
      %v651 = vmax.f32 %v649, %v650
      %v652 = vsel %vm295, %v466, -inf
      %v653 = vrot.slane %v652, 4
      %v654 = vmax.f32 %v652, %v653
      %v655 = vrot.slane %v654, 2
      %v656 = vmax.f32 %v654, %v655
      %v657 = vrot.slane %v656, 1
      %v658 = vmax.f32 %v656, %v657
      %v659 = vsel %vm295, %v469, -inf
      %v660 = vrot.slane %v659, 4
      %v661 = vmax.f32 %v659, %v660
      %v662 = vrot.slane %v661, 2
      %v663 = vmax.f32 %v661, %v662
      %v664 = vrot.slane %v663, 1
      %v665 = vmax.f32 %v663, %v664
      %v666 = vsel %vm295, %v474, -inf
      %v667 = vrot.slane %v666, 4
      %v668 = vmax.f32 %v666, %v667
      %v669 = vrot.slane %v668, 2
      %v670 = vmax.f32 %v668, %v669
      %v671 = vrot.slane %v670, 1
      %v672 = vmax.f32 %v670, %v671
      %v673 = vsel %vm295, %v477, -inf
      %v674 = vrot.slane %v673, 4
      %v675 = vmax.f32 %v673, %v674
      %v676 = vrot.slane %v675, 2
      %v677 = vmax.f32 %v675, %v676
      %v678 = vrot.slane %v677, 1
      %v679 = vmax.f32 %v677, %v678
      %v680 = vsel %vm295, %v482, -inf
      %v681 = vrot.slane %v680, 4
      %v682 = vmax.f32 %v680, %v681
      %v683 = vrot.slane %v682, 2
      %v684 = vmax.f32 %v682, %v683
      %v685 = vrot.slane %v684, 1
      %v686 = vmax.f32 %v684, %v685
      %v687 = vsel %vm295, %v485, -inf
      %v688 = vrot.slane %v687, 4
      %v689 = vmax.f32 %v687, %v688
      %v690 = vrot.slane %v689, 2
      %v691 = vmax.f32 %v689, %v690
      %v692 = vrot.slane %v691, 1
      %v693 = vmax.f32 %v691, %v692
      %v694 = vsel %vm295, %v490, -inf
      %v695 = vrot.slane %v694, 4
      %v696 = vmax.f32 %v694, %v695
      %v697 = vrot.slane %v696, 2
      %v698 = vmax.f32 %v696, %v697
      %v699 = vrot.slane %v698, 1
      %v700 = vmax.f32 %v698, %v699
      %v701 = vsel %vm295, %v493, -inf
      %v702 = vrot.slane %v701, 4
      %v703 = vmax.f32 %v701, %v702
      %v704 = vrot.slane %v703, 2
      %v705 = vmax.f32 %v703, %v704
      %v706 = vrot.slane %v705, 1
      %v707 = vmax.f32 %v705, %v706
      %v708 = vsel %vm295, %v498, -inf
      %v709 = vrot.slane %v708, 4
      %v710 = vmax.f32 %v708, %v709
      %v711 = vrot.slane %v710, 2
      %v712 = vmax.f32 %v710, %v711
      %v713 = vrot.slane %v712, 1
      %v714 = vmax.f32 %v712, %v713
      %v715 = vsel %vm295, %v501, -inf
      %v716 = vrot.slane %v715, 4
      %v717 = vmax.f32 %v715, %v716
      %v718 = vrot.slane %v717, 2
      %v719 = vmax.f32 %v717, %v718
      %v720 = vrot.slane %v719, 1
      %v721 = vmax.f32 %v719, %v720
      %v722 = vsel %vm295, %v506, -inf
      %v723 = vrot.slane %v722, 4
      %v724 = vmax.f32 %v722, %v723
      %v725 = vrot.slane %v724, 2
      %v726 = vmax.f32 %v724, %v725
      %v727 = vrot.slane %v726, 1
      %v728 = vmax.f32 %v726, %v727
      %v729 = vsel %vm295, %v509, -inf
      %v730 = vrot.slane %v729, 4
      %v731 = vmax.f32 %v729, %v730
      %v732 = vrot.slane %v731, 2
      %v733 = vmax.f32 %v731, %v732
      %v734 = vrot.slane %v733, 1
      %v735 = vmax.f32 %v733, %v734
      %v736 = vsub.f32 %v386, %v518
      %v737 = vsub.f32 %v389, %v525
      %v738 = vsub.f32 %v394, %v532
      %v739 = vsub.f32 %v397, %v539
      %v740 = vsub.f32 %v402, %v546
      %v741 = vsub.f32 %v405, %v553
      %v742 = vsub.f32 %v410, %v560
      %v743 = vsub.f32 %v413, %v567
      %v744 = vsub.f32 %v418, %v574
      %v745 = vsub.f32 %v421, %v581
      %v746 = vsub.f32 %v426, %v588
      %v747 = vsub.f32 %v429, %v595
      %v748 = vsub.f32 %v434, %v602
      %v749 = vsub.f32 %v437, %v609
      %v750 = vsub.f32 %v442, %v616
      %v751 = vsub.f32 %v445, %v623
      %v752 = vsub.f32 %v450, %v630
      %v753 = vsub.f32 %v453, %v637
      %v754 = vsub.f32 %v458, %v644
      %v755 = vsub.f32 %v461, %v651
      %v756 = vsub.f32 %v466, %v658
      %v757 = vsub.f32 %v469, %v665
      %v758 = vsub.f32 %v474, %v672
      %v759 = vsub.f32 %v477, %v679
      %v760 = vsub.f32 %v482, %v686
      %v761 = vsub.f32 %v485, %v693
      %v762 = vsub.f32 %v490, %v700
      %v763 = vsub.f32 %v493, %v707
      %v764 = vsub.f32 %v498, %v714
      %v765 = vsub.f32 %v501, %v721
      %v766 = vsub.f32 %v506, %v728
      %v767 = vsub.f32 %v509, %v735
      %v768 = vmul.f32 %v736, 1.442695
      %v769 = vpow.pop %v768
      %v770 = vmul.f32 %v737, 1.442695
      %v771 = vpow.pop %v770
      %v772 = vmul.f32 %v738, 1.442695
      %v773 = vpow.pop %v772
      %v774 = vmul.f32 %v739, 1.442695
      %v775 = vpow.pop %v774
      %v776 = vmul.f32 %v740, 1.442695
      %v777 = vpow.pop %v776
      %v778 = vmul.f32 %v741, 1.442695
      %v779 = vpow.pop %v778
      %v780 = vmul.f32 %v742, 1.442695
      %v781 = vpow.pop %v780
      %v782 = vmul.f32 %v743, 1.442695
      %v783 = vpow.pop %v782
      %v784 = vmul.f32 %v744, 1.442695
      %v785 = vpow.pop %v784
      %v786 = vmul.f32 %v745, 1.442695
      %v787 = vpow.pop %v786
      %v788 = vmul.f32 %v746, 1.442695
      %v789 = vpow.pop %v788
      %v790 = vmul.f32 %v747, 1.442695
      %v791 = vpow.pop %v790
      %v792 = vmul.f32 %v748, 1.442695
      %v793 = vpow.pop %v792
      %v794 = vmul.f32 %v749, 1.442695
      %v795 = vpow.pop %v794
      %v796 = vmul.f32 %v750, 1.442695
      %v797 = vpow.pop %v796
      %v798 = vmul.f32 %v751, 1.442695
      %v799 = vpow.pop %v798
      %v800 = vmul.f32 %v752, 1.442695
      %v801 = vpow.pop %v800
      %v802 = vmul.f32 %v753, 1.442695
      %v803 = vpow.pop %v802
      %v804 = vmul.f32 %v754, 1.442695
      %v805 = vpow.pop %v804
      %v806 = vmul.f32 %v755, 1.442695
      %v807 = vpow.pop %v806
      %v808 = vmul.f32 %v756, 1.442695
      %v809 = vpow.pop %v808
      %v810 = vmul.f32 %v757, 1.442695
      %v811 = vpow.pop %v810
      %v812 = vmul.f32 %v758, 1.442695
      %v813 = vpow.pop %v812
      %v814 = vmul.f32 %v759, 1.442695
      %v815 = vpow.pop %v814
      %v816 = vmul.f32 %v760, 1.442695
      %v817 = vpow.pop %v816
      %v818 = vmul.f32 %v761, 1.442695
      %v819 = vpow.pop %v818
      %v820 = vmul.f32 %v762, 1.442695
      %v821 = vpow.pop %v820
      %v822 = vmul.f32 %v763, 1.442695
      %v823 = vpow.pop %v822
      %v824 = vmul.f32 %v764, 1.442695
      %v825 = vpow.pop %v824
      %v826 = vmul.f32 %v765, 1.442695
      %v827 = vpow.pop %v826
      %v828 = vmul.f32 %v766, 1.442695
      %v829 = vpow.pop %v828
      %v830 = vmul.f32 %v767, 1.442695
      %v831 = vpow.pop %v830
      %v832 = vsel %vm295, %v769, 0.0
      %v833 = vrot.slane %v832, 4
      %v834 = vadd.f32 %v832, %v833
      %v835 = vrot.slane %v834, 2
      %v836 = vadd.f32 %v834, %v835
      %v837 = vrot.slane %v836, 1
      %v838 = vadd.f32 %v836, %v837
      %v839 = vsel %vm295, %v771, 0.0
      %v840 = vrot.slane %v839, 4
      %v841 = vadd.f32 %v839, %v840
      %v842 = vrot.slane %v841, 2
      %v843 = vadd.f32 %v841, %v842
      %v844 = vrot.slane %v843, 1
      %v845 = vadd.f32 %v843, %v844
      %v846 = vsel %vm295, %v773, 0.0
      %v847 = vrot.slane %v846, 4
      %v848 = vadd.f32 %v846, %v847
      %v849 = vrot.slane %v848, 2
      %v850 = vadd.f32 %v848, %v849
      %v851 = vrot.slane %v850, 1
      %v852 = vadd.f32 %v850, %v851
      %v853 = vsel %vm295, %v775, 0.0
      %v854 = vrot.slane %v853, 4
      %v855 = vadd.f32 %v853, %v854
      %v856 = vrot.slane %v855, 2
      %v857 = vadd.f32 %v855, %v856
      %v858 = vrot.slane %v857, 1
      %v859 = vadd.f32 %v857, %v858
      %v860 = vsel %vm295, %v777, 0.0
      %v861 = vrot.slane %v860, 4
      %v862 = vadd.f32 %v860, %v861
      %v863 = vrot.slane %v862, 2
      %v864 = vadd.f32 %v862, %v863
      %v865 = vrot.slane %v864, 1
      %v866 = vadd.f32 %v864, %v865
      %v867 = vsel %vm295, %v779, 0.0
      %v868 = vrot.slane %v867, 4
      %v869 = vadd.f32 %v867, %v868
      %v870 = vrot.slane %v869, 2
      %v871 = vadd.f32 %v869, %v870
      %v872 = vrot.slane %v871, 1
      %v873 = vadd.f32 %v871, %v872
      %v874 = vsel %vm295, %v781, 0.0
      %v875 = vrot.slane %v874, 4
      %v876 = vadd.f32 %v874, %v875
      %v877 = vrot.slane %v876, 2
      %v878 = vadd.f32 %v876, %v877
      %v879 = vrot.slane %v878, 1
      %v880 = vadd.f32 %v878, %v879
      %v881 = vsel %vm295, %v783, 0.0
      %v882 = vrot.slane %v881, 4
      %v883 = vadd.f32 %v881, %v882
      %v884 = vrot.slane %v883, 2
      %v885 = vadd.f32 %v883, %v884
      %v886 = vrot.slane %v885, 1
      %v887 = vadd.f32 %v885, %v886
      %v888 = vsel %vm295, %v785, 0.0
      %v889 = vrot.slane %v888, 4
      %v890 = vadd.f32 %v888, %v889
      %v891 = vrot.slane %v890, 2
      %v892 = vadd.f32 %v890, %v891
      %v893 = vrot.slane %v892, 1
      %v894 = vadd.f32 %v892, %v893
      %v895 = vsel %vm295, %v787, 0.0
      %v896 = vrot.slane %v895, 4
      %v897 = vadd.f32 %v895, %v896
      %v898 = vrot.slane %v897, 2
      %v899 = vadd.f32 %v897, %v898
      %v900 = vrot.slane %v899, 1
      %v901 = vadd.f32 %v899, %v900
      %v902 = vsel %vm295, %v789, 0.0
      %v903 = vrot.slane %v902, 4
      %v904 = vadd.f32 %v902, %v903
      %v905 = vrot.slane %v904, 2
      %v906 = vadd.f32 %v904, %v905
      %v907 = vrot.slane %v906, 1
      %v908 = vadd.f32 %v906, %v907
      %v909 = vsel %vm295, %v791, 0.0
      %v910 = vrot.slane %v909, 4
      %v911 = vadd.f32 %v909, %v910
      %v912 = vrot.slane %v911, 2
      %v913 = vadd.f32 %v911, %v912
      %v914 = vrot.slane %v913, 1
      %v915 = vadd.f32 %v913, %v914
      %v916 = vsel %vm295, %v793, 0.0
      %v917 = vrot.slane %v916, 4
      %v918 = vadd.f32 %v916, %v917
      %v919 = vrot.slane %v918, 2
      %v920 = vadd.f32 %v918, %v919
      %v921 = vrot.slane %v920, 1
      %v922 = vadd.f32 %v920, %v921
      %v923 = vsel %vm295, %v795, 0.0
      %v924 = vrot.slane %v923, 4
      %v925 = vadd.f32 %v923, %v924
      %v926 = vrot.slane %v925, 2
      %v927 = vadd.f32 %v925, %v926
      %v928 = vrot.slane %v927, 1
      %v929 = vadd.f32 %v927, %v928
      %v930 = vsel %vm295, %v797, 0.0
      %v931 = vrot.slane %v930, 4
      %v932 = vadd.f32 %v930, %v931
      %v933 = vrot.slane %v932, 2
      %v934 = vadd.f32 %v932, %v933
      %v935 = vrot.slane %v934, 1
      %v936 = vadd.f32 %v934, %v935
      %v937 = vsel %vm295, %v799, 0.0
      %v938 = vrot.slane %v937, 4
      %v939 = vadd.f32 %v937, %v938
      %v940 = vrot.slane %v939, 2
      %v941 = vadd.f32 %v939, %v940
      %v942 = vrot.slane %v941, 1
      %v943 = vadd.f32 %v941, %v942
      %v944 = vsel %vm295, %v801, 0.0
      %v945 = vrot.slane %v944, 4
      %v946 = vadd.f32 %v944, %v945
      %v947 = vrot.slane %v946, 2
      %v948 = vadd.f32 %v946, %v947
      %v949 = vrot.slane %v948, 1
      %v950 = vadd.f32 %v948, %v949
      %v951 = vsel %vm295, %v803, 0.0
      %v952 = vrot.slane %v951, 4
      %v953 = vadd.f32 %v951, %v952
      %v954 = vrot.slane %v953, 2
      %v955 = vadd.f32 %v953, %v954
      %v956 = vrot.slane %v955, 1
      %v957 = vadd.f32 %v955, %v956
      %v958 = vsel %vm295, %v805, 0.0
      %v959 = vrot.slane %v958, 4
      %v960 = vadd.f32 %v958, %v959
      %v961 = vrot.slane %v960, 2
      %v962 = vadd.f32 %v960, %v961
      %v963 = vrot.slane %v962, 1
      %v964 = vadd.f32 %v962, %v963
      %v965 = vsel %vm295, %v807, 0.0
      %v966 = vrot.slane %v965, 4
      %v967 = vadd.f32 %v965, %v966
      %v968 = vrot.slane %v967, 2
      %v969 = vadd.f32 %v967, %v968
      %v970 = vrot.slane %v969, 1
      %v971 = vadd.f32 %v969, %v970
      %v972 = vsel %vm295, %v809, 0.0
      %v973 = vrot.slane %v972, 4
      %v974 = vadd.f32 %v972, %v973
      %v975 = vrot.slane %v974, 2
      %v976 = vadd.f32 %v974, %v975
      %v977 = vrot.slane %v976, 1
      %v978 = vadd.f32 %v976, %v977
      %v979 = vsel %vm295, %v811, 0.0
      %v980 = vrot.slane %v979, 4
      %v981 = vadd.f32 %v979, %v980
      %v982 = vrot.slane %v981, 2
      %v983 = vadd.f32 %v981, %v982
      %v984 = vrot.slane %v983, 1
      %v985 = vadd.f32 %v983, %v984
      %v986 = vsel %vm295, %v813, 0.0
      %v987 = vrot.slane %v986, 4
      %v988 = vadd.f32 %v986, %v987
      %v989 = vrot.slane %v988, 2
      %v990 = vadd.f32 %v988, %v989
      %v991 = vrot.slane %v990, 1
      %v992 = vadd.f32 %v990, %v991
      %v993 = vsel %vm295, %v815, 0.0
      %v994 = vrot.slane %v993, 4
      %v995 = vadd.f32 %v993, %v994
      %v996 = vrot.slane %v995, 2
      %v997 = vadd.f32 %v995, %v996
      %v998 = vrot.slane %v997, 1
      %v999 = vadd.f32 %v997, %v998
      %v1000 = vsel %vm295, %v817, 0.0
      %v1001 = vrot.slane %v1000, 4
      %v1002 = vadd.f32 %v1000, %v1001
      %v1003 = vrot.slane %v1002, 2
      %v1004 = vadd.f32 %v1002, %v1003
      %v1005 = vrot.slane %v1004, 1
      %v1006 = vadd.f32 %v1004, %v1005
      %v1007 = vsel %vm295, %v819, 0.0
      %v1008 = vrot.slane %v1007, 4
      %v1009 = vadd.f32 %v1007, %v1008
      %v1010 = vrot.slane %v1009, 2
      %v1011 = vadd.f32 %v1009, %v1010
      %v1012 = vrot.slane %v1011, 1
      %v1013 = vadd.f32 %v1011, %v1012
      %v1014 = vsel %vm295, %v821, 0.0
      %v1015 = vrot.slane %v1014, 4
      %v1016 = vadd.f32 %v1014, %v1015
      %v1017 = vrot.slane %v1016, 2
      %v1018 = vadd.f32 %v1016, %v1017
      %v1019 = vrot.slane %v1018, 1
      %v1020 = vadd.f32 %v1018, %v1019
      %v1021 = vsel %vm295, %v823, 0.0
      %v1022 = vrot.slane %v1021, 4
      %v1023 = vadd.f32 %v1021, %v1022
      %v1024 = vrot.slane %v1023, 2
      %v1025 = vadd.f32 %v1023, %v1024
      %v1026 = vrot.slane %v1025, 1
      %v1027 = vadd.f32 %v1025, %v1026
      %v1028 = vsel %vm295, %v825, 0.0
      %v1029 = vrot.slane %v1028, 4
      %v1030 = vadd.f32 %v1028, %v1029
      %v1031 = vrot.slane %v1030, 2
      %v1032 = vadd.f32 %v1030, %v1031
      %v1033 = vrot.slane %v1032, 1
      %v1034 = vadd.f32 %v1032, %v1033
      %v1035 = vsel %vm295, %v827, 0.0
      %v1036 = vrot.slane %v1035, 4
      %v1037 = vadd.f32 %v1035, %v1036
      %v1038 = vrot.slane %v1037, 2
      %v1039 = vadd.f32 %v1037, %v1038
      %v1040 = vrot.slane %v1039, 1
      %v1041 = vadd.f32 %v1039, %v1040
      %v1042 = vsel %vm295, %v829, 0.0
      %v1043 = vrot.slane %v1042, 4
      %v1044 = vadd.f32 %v1042, %v1043
      %v1045 = vrot.slane %v1044, 2
      %v1046 = vadd.f32 %v1044, %v1045
      %v1047 = vrot.slane %v1046, 1
      %v1048 = vadd.f32 %v1046, %v1047
      %v1049 = vsel %vm295, %v831, 0.0
      %v1050 = vrot.slane %v1049, 4
      %v1051 = vadd.f32 %v1049, %v1050
      %v1052 = vrot.slane %v1051, 2
      %v1053 = vadd.f32 %v1051, %v1052
      %v1054 = vrot.slane %v1053, 1
      %v1055 = vadd.f32 %v1053, %v1054
      %v1056 = vrcp.pop %v838
      %v1057 = vmul.f32 %v769, %v1056
      %v1058 = vrcp.pop %v845
      %v1059 = vmul.f32 %v771, %v1058
      %v1060 = vrcp.pop %v852
      %v1061 = vmul.f32 %v773, %v1060
      %v1062 = vrcp.pop %v859
      %v1063 = vmul.f32 %v775, %v1062
      %v1064 = vrcp.pop %v866
      %v1065 = vmul.f32 %v777, %v1064
      %v1066 = vrcp.pop %v873
      %v1067 = vmul.f32 %v779, %v1066
      %v1068 = vrcp.pop %v880
      %v1069 = vmul.f32 %v781, %v1068
      %v1070 = vrcp.pop %v887
      %v1071 = vmul.f32 %v783, %v1070
      %v1072 = vrcp.pop %v894
      %v1073 = vmul.f32 %v785, %v1072
      %v1074 = vrcp.pop %v901
      %v1075 = vmul.f32 %v787, %v1074
      %v1076 = vrcp.pop %v908
      %v1077 = vmul.f32 %v789, %v1076
      %v1078 = vrcp.pop %v915
      %v1079 = vmul.f32 %v791, %v1078
      %v1080 = vrcp.pop %v922
      %v1081 = vmul.f32 %v793, %v1080
      %v1082 = vrcp.pop %v929
      %v1083 = vmul.f32 %v795, %v1082
      %v1084 = vrcp.pop %v936
      %v1085 = vmul.f32 %v797, %v1084
      %v1086 = vrcp.pop %v943
      %v1087 = vmul.f32 %v799, %v1086
      %v1088 = vrcp.pop %v950
      %v1089 = vmul.f32 %v801, %v1088
      %v1090 = vrcp.pop %v957
      %v1091 = vmul.f32 %v803, %v1090
      %v1092 = vrcp.pop %v964
      %v1093 = vmul.f32 %v805, %v1092
      %v1094 = vrcp.pop %v971
      %v1095 = vmul.f32 %v807, %v1094
      %v1096 = vrcp.pop %v978
      %v1097 = vmul.f32 %v809, %v1096
      %v1098 = vrcp.pop %v985
      %v1099 = vmul.f32 %v811, %v1098
      %v1100 = vrcp.pop %v992
      %v1101 = vmul.f32 %v813, %v1100
      %v1102 = vrcp.pop %v999
      %v1103 = vmul.f32 %v815, %v1102
      %v1104 = vrcp.pop %v1006
      %v1105 = vmul.f32 %v817, %v1104
      %v1106 = vrcp.pop %v1013
      %v1107 = vmul.f32 %v819, %v1106
      %v1108 = vrcp.pop %v1020
      %v1109 = vmul.f32 %v821, %v1108
      %v1110 = vrcp.pop %v1027
      %v1111 = vmul.f32 %v823, %v1110
      %v1112 = vrcp.pop %v1034
      %v1113 = vmul.f32 %v825, %v1112
      %v1114 = vrcp.pop %v1041
      %v1115 = vmul.f32 %v827, %v1114
      %v1116 = vrcp.pop %v1048
      %v1117 = vmul.f32 %v829, %v1116
      %v1118 = vrcp.pop %v1055
      %v1119 = vmul.f32 %v831, %v1118
      %1120 = vst.msk [vmem:[%s172] sm:$0xff] %vm295, %v1057
      %1121 = vst.msk [vmem:[%s172 + $0x8] sm:$0xff] %vm295, %v1059
      %1122 = vst.msk [vmem:[%s172 + $0x10] sm:$0xff] %vm295, %v1061
      %1123 = vst.msk [vmem:[%s172 + $0x18] sm:$0xff] %vm295, %v1063
      %1124 = vst.msk [vmem:[%s172 + $0x20] sm:$0xff] %vm295, %v1065
      %1125 = vst.msk [vmem:[%s172 + $0x28] sm:$0xff] %vm295, %v1067
      %1126 = vst.msk [vmem:[%s172 + $0x30] sm:$0xff] %vm295, %v1069
      %1127 = vst.msk [vmem:[%s172 + $0x38] sm:$0xff] %vm295, %v1071
      %1128 = vst.msk [vmem:[%s172 + $0x40] sm:$0xff] %vm295, %v1073
      %1129 = vst.msk [vmem:[%s172 + $0x48] sm:$0xff] %vm295, %v1075
      %1130 = vst.msk [vmem:[%s172 + $0x50] sm:$0xff] %vm295, %v1077
      %1131 = vst.msk [vmem:[%s172 + $0x58] sm:$0xff] %vm295, %v1079
      %1132 = vst.msk [vmem:[%s172 + $0x60] sm:$0xff] %vm295, %v1081
      %1133 = vst.msk [vmem:[%s172 + $0x68] sm:$0xff] %vm295, %v1083
      %1134 = vst.msk [vmem:[%s172 + $0x70] sm:$0xff] %vm295, %v1085
      %1135 = vst.msk [vmem:[%s172 + $0x78] sm:$0xff] %vm295, %v1087
      %1136 = vst.msk [vmem:[%s172 + $0x80] sm:$0xff] %vm295, %v1089
      %1137 = vst.msk [vmem:[%s172 + $0x88] sm:$0xff] %vm295, %v1091
      %1138 = vst.msk [vmem:[%s172 + $0x90] sm:$0xff] %vm295, %v1093
      %1139 = vst.msk [vmem:[%s172 + $0x98] sm:$0xff] %vm295, %v1095
      %1140 = vst.msk [vmem:[%s172 + $0xa0] sm:$0xff] %vm295, %v1097
      %1141 = vst.msk [vmem:[%s172 + $0xa8] sm:$0xff] %vm295, %v1099
      %1142 = vst.msk [vmem:[%s172 + $0xb0] sm:$0xff] %vm295, %v1101
      %1143 = vst.msk [vmem:[%s172 + $0xb8] sm:$0xff] %vm295, %v1103
      %1144 = vst.msk [vmem:[%s172 + $0xc0] sm:$0xff] %vm295, %v1105
      %1145 = vst.msk [vmem:[%s172 + $0xc8] sm:$0xff] %vm295, %v1107
      %1146 = vst.msk [vmem:[%s172 + $0xd0] sm:$0xff] %vm295, %v1109
      %1147 = vst.msk [vmem:[%s172 + $0xd8] sm:$0xff] %vm295, %v1111
      %1148 = vst.msk [vmem:[%s172 + $0xe0] sm:$0xff] %vm295, %v1113
      %1149 = vst.msk [vmem:[%s172 + $0xe8] sm:$0xff] %vm295, %v1115
      %1150 = vst.msk [vmem:[%s172 + $0xf0] sm:$0xff] %vm295, %v1117
      %1151 = vst.msk [vmem:[%s172 + $0xf8] sm:$0xff] %vm295, %v1119
      %s1152 = smul.u32 32, %s14
      %p1153 = scmp.lt.s32.totalorder %s1152, 63
      %s1154 = scalar_select %p1153, %s1152, 63
      %s1155 = smul.addr %s1154, 8
      %s1156 = scalar_lea.vmem %s3, %s1155
      // Predicated region
      $region33: #{tpu_custom_call.1} parent=31 // pred_check
        %p1157 = pneg %p100
      $region34: #{tpu_custom_call.1} parent=31 // pred_check_branch
        %1159 = sbr.rel (%p1157) target = $region36
      $region35: #{tpu_custom_call.1} parent=31 // pred_region
        %s1160 = smul.u32 32, %s14
      $region36: #{tpu_custom_call.1} parent=31 // pred_fallthru
        _
    $region32: #{tpu_custom_call.1} parent=5 // pred_fallthru
      _
    %p1161 = scmp.le.s32.totalorder 2, %s9
    // Predicated region
    $region37: #{tpu_custom_call.1} parent=5 // pred_check
      %p1162 = pneg %p1161
    $region38: #{tpu_custom_call.1} parent=5 // pred_check_branch
      %1164 = sbr.rel (%p1162) target = $region40
    $region39: #{tpu_custom_call.1} parent=5 // pred_region
      %s1165 = ssub.s32 %s9, 2
      // Predicated region
      $region41: #{tpu_custom_call.1} parent=39 // pred_check
        %p1166 = pneg %p106
      $region42: #{tpu_custom_call.1} parent=39 // pred_check_branch
        %1168 = sbr.rel (%p1166) target = $region44
      $region43: #{tpu_custom_call.1} parent=39 // pred_region
        %s1169 = smul.u32 32, %s15
        %p1170 = scmp.lt.s32.totalorder %s1169, 63
        %s1171 = scalar_select %p1170, %s1169, 63
        %s1172 = smul.addr %s1171, 8
        %s1173 = scalar_lea.vmem %s3, %s1172
      $region44: #{tpu_custom_call.1} parent=39 // pred_fallthru
        _
    $region40: #{tpu_custom_call.1} parent=5 // pred_fallthru
      _
  $region6: #{tpu_custom_call.1} parent=0 // loop_footer
    %s13 = sadd.s32 1, %s9
  $region7: #{tpu_custom_call.1} parent=0 // loop_footer_branch
    %8 = sbr.rel target = $region3
  $region8: #{tpu_custom_call.1} parent=0 // loop_exit
    _

</llo_original>
